<compile_context>
chip_gen: v5e
topology: v5e:2x2
jax: 0.10.0
libtpu: 0.0.40
codegen_flags: <defaults>
</compile_context>

<pallas_src>
import jax
import jax.numpy as jnp
from jax.experimental import pallas as pl
from jax.experimental.pallas import tpu as pltpu

_H = 32          # hidden width of Tau
_CHUNK = 256     # lanes (batch elements) processed per inner-loop step


def _make_tau_kernel(chunk, n_chunks):
    H = _H

    def kernel(x_ref, w1_ref, w234_ref, baux_ref, o_ref):
        # x_ref:    (tile_b, D)  bf16  natural layout (batch on sublanes)
        # w1_ref:   (H, D)       bf16  resident
        # w234_ref: (2H+1, H)    bf16  resident, packed [W2; W3; W4]
        # baux_ref: (H, 4)       f32   resident, packed [b1 b2 b3 b4(row 0)]
        # o_ref:    (1, tile_b)  f32   batch on lanes (lane-dense output)
        w1 = w1_ref[...]
        w2 = w234_ref[0:H, :]
        w3 = w234_ref[H:2 * H, :]
        w4 = w234_ref[2 * H:2 * H + 1, :]
        b1 = baux_ref[:, 0:1]
        b2 = baux_ref[:, 1:2]
        b3 = baux_ref[:, 2:3]
        b4 = baux_ref[0:1, 3:4]
        cdt = w1.dtype

        # Fully-unrolled static chunk loop: static slice starts (zero address
        # math), bounded live intermediates per chunk (no (32, tile_b) spills).
        for c in range(n_chunks):
            lo = c * chunk
            hi = lo + chunk
            xc = x_ref[lo:hi, :]                                   # (C, D) bf16

            # Layer 1: W1 [H,D] . xc^T [D,C] -> (H, C); NT contraction over D.
            h = jax.lax.dot_general(
                w1, xc, (((1,), (1,)), ((), ())),
                preferred_element_type=jnp.float32)
            h = jnp.maximum(h + b1, 0.0)

            # Layers 2/3: (H,H) @ (H,C), bf16 MXU, f32 accumulate.
            h = jnp.dot(w2, h.astype(cdt), preferred_element_type=jnp.float32)
            h = jnp.maximum(h + b2, 0.0)
            h = jnp.dot(w3, h.astype(cdt), preferred_element_type=jnp.float32)
            h = jnp.maximum(h + b3, 0.0)

            # Output layer: (1,H) @ (H,C) + Softplus (logaddexp(z,0) is stable).
            z = jnp.dot(w4, h.astype(cdt), preferred_element_type=jnp.float32)
            z = z + b4
            o_ref[:, lo:hi] = jnp.logaddexp(z, 0.0).astype(o_ref.dtype)

    return kernel


def tau_forward(x, params, *, chunk=_CHUNK, max_chunks_per_tile=16,
                compute_dtype=jnp.bfloat16):
    """x: [B, input_dim] f32. params in PyTorch layout (W: [out, in], b: [out]).

    Returns [B, 1] f32, matching Tau.forward.
    """
    B, D = x.shape
    H = params["W1"].shape[0]
    assert H == _H

    # --- Tiling: large lane tiles (<= max_chunks_per_tile * chunk), chunked
    # inside the kernel; even tile count (>= 2) once batch > one chunk so both
    # v7x TensorCores get work under dimension_semantics=("parallel",).
    total_chunks = max(1, (B + chunk - 1) // chunk)
    if total_chunks == 1:
        num_tiles, chunks_per_tile = 1, 1
    else:
        num_tiles = max(2, (total_chunks + max_chunks_per_tile - 1)
                        // max_chunks_per_tile)
        if num_tiles % 2:
            num_tiles += 1
        chunks_per_tile = (total_chunks + num_tiles - 1) // num_tiles
    tile_b = chunks_per_tile * chunk
    B_pad = num_tiles * tile_b

    # --- Input: natural [B, D] layout; cheap row zero-pad only when needed
    # (zero rows -> finite softplus outputs in the discarded region, no NaNs).
    x_c = x.astype(compute_dtype)
    if B_pad != B:
        x_c = jnp.pad(x_c, ((0, B_pad - B), (0, 0)))

    # --- Tiny grid-invariant params packed into two resident VMEM slabs.
    w1 = params["W1"].astype(compute_dtype)                              # (H, D)
    w234 = jnp.concatenate(
        [params["W2"], params["W3"], params["W4"]], axis=0
    ).astype(compute_dtype)                                              # (2H+1, H)
    b4col = jnp.zeros((H,), jnp.float32).at[0].set(params["b4"][0])
    baux = jnp.stack(
        [params["b1"], params["b2"], params["b3"], b4col], axis=1
    ).astype(jnp.float32)                                                # (H, 4)

    itemsize = jnp.dtype(compute_dtype).itemsize
    flops = 2 * B_pad * (D * H + 2 * H * H + H) + 4 * B_pad * H
    cost = pl.CostEstimate(
        flops=flops,
        transcendentals=2 * B_pad,  # exp + log per output element
        bytes_accessed=(B_pad * D * itemsize
                        + (w1.size + w234.size) * itemsize
                        + baux.size * 4 + B_pad * 4),
    )

    def resident(shape):
        # Whole-array block, same block every grid step -> stays in VMEM.
        return pl.BlockSpec(shape, lambda i: (0,) * len(shape))

    kernel = _make_tau_kernel(chunk, chunks_per_tile)

    out = pl.pallas_call(
        kernel,
        out_shape=jax.ShapeDtypeStruct((1, B_pad), jnp.float32),
        grid_spec=pltpu.PrefetchScalarGridSpec(
            num_scalar_prefetch=0,
            grid=(num_tiles,),
            in_specs=[
                pl.BlockSpec((tile_b, D), lambda i: (i, 0)),   # x, natural layout
                resident((H, D)),                              # W1
                resident((2 * H + 1, H)),                      # [W2; W3; W4]
                resident((H, 4)),                              # [b1 b2 b3 b4]
            ],
            out_specs=pl.BlockSpec((1, tile_b), lambda i: (0, i)),
        ),
        compiler_params=pltpu.CompilerParams(
            dimension_semantics=("parallel",)),
        cost_estimate=cost,
    )(x_c, w1, w234, baux)

    return out[0, :B].reshape(B, 1)


def init_params(key, input_dim, hidden=_H):
    """Deterministic synthetic init, PyTorch nn.Linear layout (W:[out,in], b:[out])."""
    keys = jax.random.split(key, 8)

    def linear(kw, kb, fan_in, fan_out):
        bound = 1.0 / jnp.sqrt(jnp.float32(fan_in))
        W = jax.random.uniform(kw, (fan_out, fan_in), jnp.float32, -bound, bound)
        b = jax.random.uniform(kb, (fan_out,), jnp.float32, -bound, bound)
        return W, b

    W1, b1 = linear(keys[0], keys[1], input_dim, hidden)
    W2, b2 = linear(keys[2], keys[3], hidden, hidden)
    W3, b3 = linear(keys[4], keys[5], hidden, hidden)
    W4, b4 = linear(keys[6], keys[7], hidden, 1)
    return {"W1": W1, "b1": b1, "W2": W2, "b2": b2,
            "W3": W3, "b3": b3, "W4": W4, "b4": b4}


def tau_ref(x, p):
    """Pure-JAX f32 reference (PyTorch layout) for correctness check."""
    h = jax.nn.relu(x @ p["W1"].T + p["b1"])
    h = jax.nn.relu(h @ p["W2"].T + p["b2"])
    h = jax.nn.relu(h @ p["W3"].T + p["b3"])
    return jax.nn.softplus(h @ p["W4"].T + p["b4"])


if __name__ == "__main__":
    key = jax.random.PRNGKey(0)
    k_x, k_p, k_x2 = jax.random.split(key, 3)

    batch, input_dim = 16, 8
    x = jax.random.normal(k_x, (batch, input_dim), jnp.float32)
    params = init_params(k_p, input_dim)

    # Single-tile path.
    out = jax.block_until_ready(tau_forward(x, params))
    ref = tau_ref(x, params)
    assert out.shape == (batch, 1), out.shape
    # bf16 MXU operands (f32 accumulation) -> deliberately relaxed tolerance
    # vs. the f32 reference.
    assert jnp.allclose(out, ref, atol=3e-2, rtol=3e-2), (
        f"max abs err {jnp.max(jnp.abs(out - ref))}")

    # Multi-tile / ragged-batch path (2 grid tiles, internal row zero-pad).
    batch2 = 1000
    x2 = jax.random.normal(k_x2, (batch2, input_dim), jnp.float32)
    out2 = jax.block_until_ready(tau_forward(x2, params))
    ref2 = tau_ref(x2, params)
    assert out2.shape == (batch2, 1), out2.shape
    assert jnp.allclose(out2, ref2, atol=3e-2, rtol=3e-2), (
        f"max abs err {jnp.max(jnp.abs(out2 - ref2))}")

    print("KERNEL_OK")
</pallas_src>

<mosaic_0001>
module attributes {stable_mosaic.version = 11 : i64} {
  func.func @kernel(%arg0: i32, %arg1: memref<256x8xbf16, #tpu.memory_space<vmem>>, %arg2: memref<32x8xbf16, #tpu.memory_space<vmem>>, %arg3: memref<65x32xbf16, #tpu.memory_space<vmem>>, %arg4: memref<32x4xf32, #tpu.memory_space<vmem>>, %arg5: memref<1x256xf32, #tpu.memory_space<vmem>>) attributes {dimension_semantics = [#tpu.dimension_semantics<parallel>], iteration_bounds = array<i64: 1>, scalar_prefetch = 0 : i64, scratch_operands = 0 : i64, tpu.core_type = #tpu.core_type<tc>, window_params = [{transform_indices = @transform_0, window_bounds = array<i64: 256, 8>}, {pipeline_mode = #tpu.pipeline_mode<synchronous>, transform_indices = @transform_1, window_bounds = array<i64: 32, 8>}, {pipeline_mode = #tpu.pipeline_mode<synchronous>, transform_indices = @transform_2, window_bounds = array<i64: 65, 32>}, {pipeline_mode = #tpu.pipeline_mode<synchronous>, transform_indices = @transform_3, window_bounds = array<i64: 32, 4>}, {transform_indices = @transform_4, window_bounds = array<i64: 1, 256>}]} {
    %c0 = arith.constant 0 : index
    %c0_0 = arith.constant 0 : index
    %0 = vector.load %arg2[%c0, %c0_0] : memref<32x8xbf16, #tpu.memory_space<vmem>>, vector<32x8xbf16>
    %c0_1 = arith.constant 0 : index
    %c0_2 = arith.constant 0 : index
    %1 = vector.load %arg3[%c0_1, %c0_2] : memref<65x32xbf16, #tpu.memory_space<vmem>>, vector<32x32xbf16>
    %c32 = arith.constant 32 : index
    %c0_3 = arith.constant 0 : index
    %2 = vector.load %arg3[%c32, %c0_3] : memref<65x32xbf16, #tpu.memory_space<vmem>>, vector<32x32xbf16>
    %c64 = arith.constant 64 : index
    %c0_4 = arith.constant 0 : index
    %3 = vector.load %arg3[%c64, %c0_4] : memref<65x32xbf16, #tpu.memory_space<vmem>>, vector<1x32xbf16>
    %c0_5 = arith.constant 0 : index
    %c0_6 = arith.constant 0 : index
    %4 = vector.load %arg4[%c0_5, %c0_6] : memref<32x4xf32, #tpu.memory_space<vmem>>, vector<32x1xf32>
    %c0_7 = arith.constant 0 : index
    %c1 = arith.constant 1 : index
    %5 = vector.load %arg4[%c0_7, %c1] : memref<32x4xf32, #tpu.memory_space<vmem>>, vector<32x1xf32>
    %c0_8 = arith.constant 0 : index
    %c2 = arith.constant 2 : index
    %6 = vector.load %arg4[%c0_8, %c2] : memref<32x4xf32, #tpu.memory_space<vmem>>, vector<32x1xf32>
    %c0_9 = arith.constant 0 : index
    %c3 = arith.constant 3 : index
    %7 = vector.load %arg4[%c0_9, %c3] : memref<32x4xf32, #tpu.memory_space<vmem>>, vector<1x1xf32>
    %c0_10 = arith.constant 0 : index
    %c0_11 = arith.constant 0 : index
    %8 = vector.load %arg1[%c0_10, %c0_11] : memref<256x8xbf16, #tpu.memory_space<vmem>>, vector<256x8xbf16>
    %cst = arith.constant dense<0.000000e+00> : vector<32x256xf32>
    %9 = tpu.matmul %0, %8, %cst {dimension_numbers = #tpu.dot_dimension_numbers<[1], [1], [0], [0], [0, 0, 1, 0], [], []>} : vector<32x8xbf16>, vector<256x8xbf16>, vector<32x256xf32> -> vector<32x256xf32>
    %10 = vector.broadcast %4 : vector<32x1xf32> to vector<32x256xf32>
    %11 = arith.addf %9, %10 : vector<32x256xf32>
    %cst_12 = arith.constant 0.000000e+00 : f32
    %12 = vector.broadcast %cst_12 : f32 to vector<32x256xf32>
    %13 = arith.maximumf %11, %12 : vector<32x256xf32>
    %14 = arith.truncf %13 : vector<32x256xf32> to vector<32x256xbf16>
    %cst_13 = arith.constant dense<0.000000e+00> : vector<32x256xf32>
    %15 = tpu.matmul %1, %14, %cst_13 {dimension_numbers = #tpu.dot_dimension_numbers<[1], [0], [0], [1], [0, 0, 1, 1], [], []>} : vector<32x32xbf16>, vector<32x256xbf16>, vector<32x256xf32> -> vector<32x256xf32>
    %16 = vector.broadcast %5 : vector<32x1xf32> to vector<32x256xf32>
    %17 = arith.addf %15, %16 : vector<32x256xf32>
    %cst_14 = arith.constant 0.000000e+00 : f32
    %18 = vector.broadcast %cst_14 : f32 to vector<32x256xf32>
    %19 = arith.maximumf %17, %18 : vector<32x256xf32>
    %20 = arith.truncf %19 : vector<32x256xf32> to vector<32x256xbf16>
    %cst_15 = arith.constant dense<0.000000e+00> : vector<32x256xf32>
    %21 = tpu.matmul %2, %20, %cst_15 {dimension_numbers = #tpu.dot_dimension_numbers<[1], [0], [0], [1], [0, 0, 1, 1], [], []>} : vector<32x32xbf16>, vector<32x256xbf16>, vector<32x256xf32> -> vector<32x256xf32>
    %22 = vector.broadcast %6 : vector<32x1xf32> to vector<32x256xf32>
    %23 = arith.addf %21, %22 : vector<32x256xf32>
    %cst_16 = arith.constant 0.000000e+00 : f32
    %24 = vector.broadcast %cst_16 : f32 to vector<32x256xf32>
    %25 = arith.maximumf %23, %24 : vector<32x256xf32>
    %26 = arith.truncf %25 : vector<32x256xf32> to vector<32x256xbf16>
    %cst_17 = arith.constant dense<0.000000e+00> : vector<1x256xf32>
    %27 = tpu.matmul %3, %26, %cst_17 {dimension_numbers = #tpu.dot_dimension_numbers<[1], [0], [0], [1], [0, 0, 1, 1], [], []>} : vector<1x32xbf16>, vector<32x256xbf16>, vector<1x256xf32> -> vector<1x256xf32>
    %28 = vector.broadcast %7 : vector<1x1xf32> to vector<1x256xf32>
    %29 = arith.addf %27, %28 : vector<1x256xf32>
    %cst_18 = arith.constant 0.000000e+00 : f32
    %30 = vector.broadcast %cst_18 : f32 to vector<1x256xf32>
    %31 = arith.maximumf %29, %30 : vector<1x256xf32>
    %32 = vector.broadcast %cst_18 : f32 to vector<1x256xf32>
    %33 = arith.subf %29, %32 : vector<1x256xf32>
    %34 = arith.cmpf one, %33, %33 : vector<1x256xf32>
    %35 = vector.broadcast %cst_18 : f32 to vector<1x256xf32>
    %36 = arith.addf %29, %35 : vector<1x256xf32>
    %37 = math.absf %33 : vector<1x256xf32>
    %cst_19 = arith.constant 0.000000e+00 : f32
    %38 = vector.broadcast %cst_19 : f32 to vector<1x256xf32>
    %39 = arith.subf %38, %37 : vector<1x256xf32>
    %40 = math.exp %39 : vector<1x256xf32>
    %41 = math.log1p %40 : vector<1x256xf32>
    %42 = arith.addf %31, %41 : vector<1x256xf32>
    %43 = arith.select %34, %36, %42 : vector<1x256xi1>, vector<1x256xf32>
    %c0_20 = arith.constant 0 : index
    %c0_21 = arith.constant 0 : index
    %44 = vector.load %arg5[%c0_20, %c0_21] : memref<1x256xf32, #tpu.memory_space<vmem>>, vector<1x256xf32>
    tpu.vector_store %arg5[%c0_20, %c0_21], %43 {strides = array<i32>} : memref<1x256xf32, #tpu.memory_space<vmem>>, vector<1x256xf32>,
    return
  }
  func.func @transform_0(%arg0: i32) -> (i32, i32) {
    %c0_i32 = arith.constant 0 : i32
    %c0_i32_0 = arith.constant 0 : i32
    return %arg0, %c0_i32 : i32, i32
  }
  func.func @transform_1(%arg0: i32) -> (i32, i32) {
    %c0_i32 = arith.constant 0 : i32
    %c0_i32_0 = arith.constant 0 : i32
    %c0_i32_1 = arith.constant 0 : i32
    return %c0_i32, %c0_i32_0 : i32, i32
  }
  func.func @transform_2(%arg0: i32) -> (i32, i32) {
    %c0_i32 = arith.constant 0 : i32
    %c0_i32_0 = arith.constant 0 : i32
    %c0_i32_1 = arith.constant 0 : i32
    return %c0_i32, %c0_i32_0 : i32, i32
  }
  func.func @transform_3(%arg0: i32) -> (i32, i32) {
    %c0_i32 = arith.constant 0 : i32
    %c0_i32_0 = arith.constant 0 : i32
    %c0_i32_1 = arith.constant 0 : i32
    return %c0_i32, %c0_i32_0 : i32, i32
  }
  func.func @transform_4(%arg0: i32) -> (i32, i32) {
    %c0_i32 = arith.constant 0 : i32
    %c0_i32_0 = arith.constant 0 : i32
    return %c0_i32, %arg0 : i32, i32
  }
}

</mosaic_0001>

<llo_original>
// kernel: tpu_custom_call.1
$region0: #{tpu_custom_call.1}
  #allocation0 [shape = 'u32[]', space=smem, size = 0x4, offset = 0x4, fixed_abs, tag = 'smem constant byte address 0x4 - core index']
  #allocation1 [shape = 'u32[72,128]{1,0:T(1,128)}', space=vmem, size = 0x9000, scoped, tag = 'internal scratch']
  %s0 = inlined_call_operand.vmem [shape: bf16[256,8], index: 0, kind: input, shape index: {}]
  %s1 = inlined_call_operand.vmem [shape: bf16[32,8], index: 1, kind: input, shape index: {}]
  %s2 = inlined_call_operand.vmem [shape: bf16[65,32], index: 2, kind: input, shape index: {}]
  %s3 = inlined_call_operand.vmem [shape: f32[32,4], index: 3, kind: input, shape index: {}]
  %s4 = inlined_call_operand.hbm [shape: f32[1,256], index: 4, kind: output, shape index: {}]
  %s5 = sld [smem:[#allocation0]]
  $region26: #{tpu_custom_call.1} parent=0
    _
  %s7 = ssub.s32 1, %s5
  %s8 = scalar_select 0, %s7, %s5
  $region1: #{tpu_custom_call.1} parent=0
    #allocation2 [shape = 'u8[1024]{0}', space=vmem, size = 0x400, scoped, tag = 'output window, operand 0, single buffered']
    #allocation3 [shape = 's32[1]{0}', space=sflag, size = 0x4, scoped, tag = 'scoped memory for tpu_custom_call.1']
    %9 = vsyncpa [#allocation3], 0
    // Predicated region
    $region2: #{tpu_custom_call.1} parent=1 // pred_check
      _
    $region3: #{tpu_custom_call.1} parent=1 // pred_check_branch
      %11 = sbr.rel (0) target = $region5
    $region4: #{tpu_custom_call.1} parent=1 // pred_region
      _
    $region5: #{tpu_custom_call.1} parent=1 // pred_fallthru
      _
    // Predicated region
    $region6: #{tpu_custom_call.1} parent=1 // pred_check
      _
    $region7: #{tpu_custom_call.1} parent=1 // pred_check_branch
      %13 = sbr.rel (0) target = $region9
    $region8: #{tpu_custom_call.1} parent=1 // pred_region
      _
    $region9: #{tpu_custom_call.1} parent=1 // pred_fallthru
      _
    // Predicated region
    $region10: #{tpu_custom_call.1} parent=1 // pred_check
      _
    $region11: #{tpu_custom_call.1} parent=1 // pred_check_branch
      %15 = sbr.rel (0) target = $region13
    $region12: #{tpu_custom_call.1} parent=1 // pred_region
      _
    $region13: #{tpu_custom_call.1} parent=1 // pred_fallthru
      _
    // Predicated region
    $region14: #{tpu_custom_call.1} parent=1 // pred_check
      _
    $region15: #{tpu_custom_call.1} parent=1 // pred_check_branch
      %17 = sbr.rel (0) target = $region17
    $region16: #{tpu_custom_call.1} parent=1 // pred_region
      _
    $region17: #{tpu_custom_call.1} parent=1 // pred_fallthru
      _
    %v19 = vld [vmem:[%s1] sm:$0xf]
    %v20 = vld [vmem:[%s1 + $0x4] sm:$0xf]
    %v21 = vld [vmem:[%s1 + $0x8] sm:$0xf]
    %v22 = vld [vmem:[%s1 + $0xc] sm:$0xf]
    %v23 = vld [vmem:[%s2] sm:$0xf]
    %v24 = vld [vmem:[%s2 + $0x4] sm:$0xf]
    %v25 = vld [vmem:[%s2 + $0x8] sm:$0xf]
    %v26 = vld [vmem:[%s2 + $0xc] sm:$0xf]
    %v27 = vld [vmem:[%s2 + $0x10] sm:$0xf]
    %v28 = vld [vmem:[%s2 + $0x14] sm:$0xf]
    %v29 = vld [vmem:[%s2 + $0x18] sm:$0xf]
    %v30 = vld [vmem:[%s2 + $0x1c] sm:$0xf]
    %v31 = vld [vmem:[%s2 + $0x20] sm:$0x1]
    %v32 = vld [vmem:[%s3] sm:$0xff]
    %v33 = vld [vmem:[%s3 + $0x8] sm:$0xff]
    %v34 = vld [vmem:[%s3 + $0x10] sm:$0xff]
    %v35 = vld [vmem:[%s3 + $0x18] sm:$0xff]
    %v36 = vld [vmem:[%s3] sm:$0x1]
    %v37 = vld [vmem:[%s0] sm:$0xf]
    %v38 = vld [vmem:[%s0 + $0x4] sm:$0xf]
    %v39 = vld [vmem:[%s0 + $0x8] sm:$0xf]
    %v40 = vld [vmem:[%s0 + $0xc] sm:$0xf]
    %v41 = vld [vmem:[%s0 + $0x10] sm:$0xf]
    %v42 = vld [vmem:[%s0 + $0x14] sm:$0xf]
    %v43 = vld [vmem:[%s0 + $0x18] sm:$0xf]
    %v44 = vld [vmem:[%s0 + $0x1c] sm:$0xf]
    %v45 = vld [vmem:[%s0 + $0x20] sm:$0xf]
    %v46 = vld [vmem:[%s0 + $0x24] sm:$0xf]
    %v47 = vld [vmem:[%s0 + $0x28] sm:$0xf]
    %v48 = vld [vmem:[%s0 + $0x2c] sm:$0xf]
    %v49 = vld [vmem:[%s0 + $0x30] sm:$0xf]
    %v50 = vld [vmem:[%s0 + $0x34] sm:$0xf]
    %v51 = vld [vmem:[%s0 + $0x38] sm:$0xf]
    %v52 = vld [vmem:[%s0 + $0x3c] sm:$0xf]
    %v53 = vld [vmem:[%s0 + $0x40] sm:$0xf]
    %v54 = vld [vmem:[%s0 + $0x44] sm:$0xf]
    %v55 = vld [vmem:[%s0 + $0x48] sm:$0xf]
    %v56 = vld [vmem:[%s0 + $0x4c] sm:$0xf]
    %v57 = vld [vmem:[%s0 + $0x50] sm:$0xf]
    %v58 = vld [vmem:[%s0 + $0x54] sm:$0xf]
    %v59 = vld [vmem:[%s0 + $0x58] sm:$0xf]
    %v60 = vld [vmem:[%s0 + $0x5c] sm:$0xf]
    %v61 = vld [vmem:[%s0 + $0x60] sm:$0xf]
    %v62 = vld [vmem:[%s0 + $0x64] sm:$0xf]
    %v63 = vld [vmem:[%s0 + $0x68] sm:$0xf]
    %v64 = vld [vmem:[%s0 + $0x6c] sm:$0xf]
    %v65 = vld [vmem:[%s0 + $0x70] sm:$0xf]
    %v66 = vld [vmem:[%s0 + $0x74] sm:$0xf]
    %v67 = vld [vmem:[%s0 + $0x78] sm:$0xf]
    %v68 = vld [vmem:[%s0 + $0x7c] sm:$0xf]
    %70 = vset.pattern.permute.xlu0 0
    %71 = vperm.xlu0 %70, %v32
    %v72 = vpop.permute.xlu0 %71
    %75 = vset.pattern.permute.xlu0 0
    %76 = vperm.xlu0 %75, %v33
    %v77 = vpop.permute.xlu0 %76
    %80 = vset.pattern.permute.xlu0 0
    %81 = vperm.xlu0 %80, %v34
    %v82 = vpop.permute.xlu0 %81
    %85 = vset.pattern.permute.xlu0 0
    %86 = vperm.xlu0 %85, %v35
    %v87 = vpop.permute.xlu0 %86
    %v93 = vunpack.c.l.b16 %v19
    %v94 = vunpack.c.l.b16 %v20
    %v95 = vunpack.c.l.b16 %v21
    %v96 = vunpack.c.l.b16 %v22
    %v97 = vpack.c.b16 %v94, %v93
    %v98 = vpack.c.b16 %v96, %v95
    %v131 = vunpack.c.l.b16 %v37
    %v132 = vunpack.c.l.b16 %v38
    %v133 = vunpack.c.l.b16 %v39
    %v134 = vunpack.c.l.b16 %v40
    %v135 = vunpack.c.l.b16 %v41
    %v136 = vunpack.c.l.b16 %v42
    %v137 = vunpack.c.l.b16 %v43
    %v138 = vunpack.c.l.b16 %v44
    %v139 = vunpack.c.l.b16 %v45
    %v140 = vunpack.c.l.b16 %v46
    %v141 = vunpack.c.l.b16 %v47
    %v142 = vunpack.c.l.b16 %v48
    %v143 = vunpack.c.l.b16 %v49
    %v144 = vunpack.c.l.b16 %v50
    %v145 = vunpack.c.l.b16 %v51
    %v146 = vunpack.c.l.b16 %v52
    %v147 = vunpack.c.l.b16 %v53
    %v148 = vunpack.c.l.b16 %v54
    %v149 = vunpack.c.l.b16 %v55
    %v150 = vunpack.c.l.b16 %v56
    %v151 = vunpack.c.l.b16 %v57
    %v152 = vunpack.c.l.b16 %v58
    %v153 = vunpack.c.l.b16 %v59
    %v154 = vunpack.c.l.b16 %v60
    %v155 = vunpack.c.l.b16 %v61
    %v156 = vunpack.c.l.b16 %v62
    %v157 = vunpack.c.l.b16 %v63
    %v158 = vunpack.c.l.b16 %v64
    %v159 = vunpack.c.l.b16 %v65
    %v160 = vunpack.c.l.b16 %v66
    %v161 = vunpack.c.l.b16 %v67
    %v162 = vunpack.c.l.b16 %v68
    %v163 = vpack.c.b16 %v132, %v131
    %v164 = vpack.c.b16 %v134, %v133
    %v165 = vpack.c.b16 %v136, %v135
    %v166 = vpack.c.b16 %v138, %v137
    %v167 = vpack.c.b16 %v140, %v139
    %v168 = vpack.c.b16 %v142, %v141
    %v169 = vpack.c.b16 %v144, %v143
    %v170 = vpack.c.b16 %v146, %v145
    %v171 = vpack.c.b16 %v148, %v147
    %v172 = vpack.c.b16 %v150, %v149
    %v173 = vpack.c.b16 %v152, %v151
    %v174 = vpack.c.b16 %v154, %v153
    %v175 = vpack.c.b16 %v156, %v155
    %v176 = vpack.c.b16 %v158, %v157
    %v177 = vpack.c.b16 %v160, %v159
    %v178 = vpack.c.b16 %v162, %v161
    %vm179 = vcmask 64512
    %v181 = vsel %vm179, %v97, 0
    %v184 = vsel %vm179, %v98, 0
    %v187 = vsel %vm179, %v163, 0
    %v190 = vsel %vm179, %v164, 0
    %v193 = vsel %vm179, %v165, 0
    %v196 = vsel %vm179, %v166, 0
    %v199 = vsel %vm179, %v167, 0
    %v202 = vsel %vm179, %v168, 0
    %v205 = vsel %vm179, %v169, 0
    %v208 = vsel %vm179, %v170, 0
    %v211 = vsel %vm179, %v171, 0
    %v214 = vsel %vm179, %v172, 0
    %v217 = vsel %vm179, %v173, 0
    %v220 = vsel %vm179, %v174, 0
    %v223 = vsel %vm179, %v175, 0
    %v226 = vsel %vm179, %v176, 0
    %v229 = vsel %vm179, %v177, 0
    %v232 = vsel %vm179, %v178, 0
    %234 = vmatpush.bf16.xpose.msra.mxu0 %v208
    %235 = vmatpush.bf16.xpose.msra.mxu0 %v205
    %236 = vmatpush.bf16.xpose.msra.mxu0 %v202
    %237 = vmatpush.bf16.xpose.msra.mxu0 %v199
    %238 = vmatpush.bf16.xpose.msra.mxu0 %v196
    %239 = vmatpush.bf16.xpose.msra.mxu0 %v193
    %240 = vmatpush.bf16.xpose.msra.mxu0 %v190
    %241 = vmatpush.bf16.xpose.msra.mxu0 %v187
    %242 = vmatmul.bf16.gmra.mxu0 %v181
    %v243 = vpop.f32.mrf.mxu0
    %v244 = vadd.f32 %v72, %v243
    %v245 = vpop.f32.mrf.mxu0
    %v246 = vadd.f32 %v77, %v245
    %247 = vmatmul.bf16.gmra.mxu0 %v184
    %v248 = vpop.f32.mrf.mxu0
    %v249 = vadd.f32 %v82, %v248
    %v250 = vpop.f32.mrf.mxu0
    %v251 = vadd.f32 %v87, %v250
    %252 = vdwg.mxu0
    %253 = vmatpush.bf16.xpose.msra.mxu0 %v232
    %254 = vmatpush.bf16.xpose.msra.mxu0 %v229
    %255 = vmatpush.bf16.xpose.msra.mxu0 %v226
    %256 = vmatpush.bf16.xpose.msra.mxu0 %v223
    %257 = vmatpush.bf16.xpose.msra.mxu0 %v220
    %258 = vmatpush.bf16.xpose.msra.mxu0 %v217
    %259 = vmatpush.bf16.xpose.msra.mxu0 %v214
    %260 = vmatpush.bf16.xpose.msra.mxu0 %v211
    %261 = vmatmul.bf16.gmra.mxu0 %v181
    %v262 = vpop.f32.mrf.mxu0
    %v263 = vadd.f32 %v72, %v262
    %v264 = vpop.f32.mrf.mxu0
    %v265 = vadd.f32 %v77, %v264
    %266 = vmatmul.bf16.gmra.mxu0 %v184
    %v267 = vpop.f32.mrf.mxu0
    %v268 = vadd.f32 %v82, %v267
    %v269 = vpop.f32.mrf.mxu0
    %v270 = vadd.f32 %v87, %v269
    %271 = vdwg.mxu0
    %v272 = vmax.f32 %v244, 0.0
    %v273 = vmax.f32 %v263, 0.0
    %v274 = vmax.f32 %v246, 0.0
    %v275 = vmax.f32 %v265, 0.0
    %v276 = vmax.f32 %v249, 0.0
    %v277 = vmax.f32 %v268, 0.0
    %v278 = vmax.f32 %v251, 0.0
    %v279 = vmax.f32 %v270, 0.0
    %v280 = vpack.c.bf16 %v274, %v272
    %v281 = vpack.c.bf16 %v275, %v273
    %v282 = vpack.c.bf16 %v278, %v276
    %v283 = vpack.c.bf16 %v279, %v277
    %284 = vset.pattern.permute.xlu0 1
    %285 = vperm.xlu0 %284, %v32
    %v286 = vpop.permute.xlu0 %285
    %288 = vset.pattern.permute.xlu0 1
    %289 = vperm.xlu0 %288, %v33
    %v290 = vpop.permute.xlu0 %289
    %292 = vset.pattern.permute.xlu0 1
    %293 = vperm.xlu0 %292, %v34
    %v294 = vpop.permute.xlu0 %293
    %296 = vset.pattern.permute.xlu0 1
    %297 = vperm.xlu0 %296, %v35
    %v298 = vpop.permute.xlu0 %297
    %v304 = vunpack.c.l.b16 %v23
    %v305 = vunpack.c.l.b16 %v24
    %v306 = vunpack.c.l.b16 %v25
    %v307 = vunpack.c.l.b16 %v26
    %v308 = vpack.c.b16 %v305, %v304
    %v309 = vpack.c.b16 %v307, %v306
    %vm310 = vcmask 261120
    %v312 = vsel %vm310, %v308, 0
    %v315 = vsel %vm310, %v309, 0
    %317 = vmatpush.bf16.msra.mxu0 0
    %318 = vmatpush.bf16.msra.mxu0 0
    %319 = vmatpush.bf16.msra.mxu0 0
    %320 = vmatpush.bf16.msra.mxu0 0
    %321 = vmatpush.bf16.msra.mxu0 0
    %322 = vmatpush.bf16.msra.mxu0 0
    %323 = vmatpush.bf16.msra.mxu0 %v282
    %324 = vmatpush.bf16.msra.mxu0 %v280
    %325 = vmatmul.bf16.gmra.mxu0 %v312
    %v326 = vpop.f32.mrf.mxu0
    %v327 = vadd.f32 %v286, %v326
    %v328 = vpop.f32.mrf.mxu0
    %v329 = vadd.f32 %v290, %v328
    %330 = vmatmul.bf16.gmra.mxu0 %v315
    %v331 = vpop.f32.mrf.mxu0
    %v332 = vadd.f32 %v294, %v331
    %v333 = vpop.f32.mrf.mxu0
    %v334 = vadd.f32 %v298, %v333
    %335 = vdwg.mxu0
    %336 = vmatpush.bf16.msra.mxu0 0
    %337 = vmatpush.bf16.msra.mxu0 0
    %338 = vmatpush.bf16.msra.mxu0 0
    %339 = vmatpush.bf16.msra.mxu0 0
    %340 = vmatpush.bf16.msra.mxu0 0
    %341 = vmatpush.bf16.msra.mxu0 0
    %342 = vmatpush.bf16.msra.mxu0 %v283
    %343 = vmatpush.bf16.msra.mxu0 %v281
    %344 = vmatmul.bf16.gmra.mxu0 %v312
    %v345 = vpop.f32.mrf.mxu0
    %v346 = vadd.f32 %v286, %v345
    %v347 = vpop.f32.mrf.mxu0
    %v348 = vadd.f32 %v290, %v347
    %349 = vmatmul.bf16.gmra.mxu0 %v315
    %v350 = vpop.f32.mrf.mxu0
    %v351 = vadd.f32 %v294, %v350
    %v352 = vpop.f32.mrf.mxu0
    %v353 = vadd.f32 %v298, %v352
    %354 = vdwg.mxu0
    %v355 = vmax.f32 %v327, 0.0
    %v356 = vmax.f32 %v346, 0.0
    %v357 = vmax.f32 %v329, 0.0
    %v358 = vmax.f32 %v348, 0.0
    %v359 = vmax.f32 %v332, 0.0
    %v360 = vmax.f32 %v351, 0.0
    %v361 = vmax.f32 %v334, 0.0
    %v362 = vmax.f32 %v353, 0.0
    %v363 = vpack.c.bf16 %v357, %v355
    %v364 = vpack.c.bf16 %v358, %v356
    %v365 = vpack.c.bf16 %v361, %v359
    %v366 = vpack.c.bf16 %v362, %v360
    %367 = vset.pattern.permute.xlu0 2
    %368 = vperm.xlu0 %367, %v32
    %v369 = vpop.permute.xlu0 %368
    %371 = vset.pattern.permute.xlu0 2
    %372 = vperm.xlu0 %371, %v33
    %v373 = vpop.permute.xlu0 %372
    %375 = vset.pattern.permute.xlu0 2
    %376 = vperm.xlu0 %375, %v34
    %v377 = vpop.permute.xlu0 %376
    %379 = vset.pattern.permute.xlu0 2
    %380 = vperm.xlu0 %379, %v35
    %v381 = vpop.permute.xlu0 %380
    %v387 = vunpack.c.l.b16 %v27
    %v388 = vunpack.c.l.b16 %v28
    %v389 = vunpack.c.l.b16 %v29
    %v390 = vunpack.c.l.b16 %v30
    %v391 = vpack.c.b16 %v388, %v387
    %v392 = vpack.c.b16 %v390, %v389
    %v394 = vsel %vm310, %v391, 0
    %v397 = vsel %vm310, %v392, 0
    %399 = vmatpush.bf16.msra.mxu0 0
    %400 = vmatpush.bf16.msra.mxu0 0
    %401 = vmatpush.bf16.msra.mxu0 0
    %402 = vmatpush.bf16.msra.mxu0 0
    %403 = vmatpush.bf16.msra.mxu0 0
    %404 = vmatpush.bf16.msra.mxu0 0
    %405 = vmatpush.bf16.msra.mxu0 %v365
    %406 = vmatpush.bf16.msra.mxu0 %v363
    %407 = vmatmul.bf16.gmra.mxu0 %v394
    %v408 = vpop.f32.mrf.mxu0
    %v409 = vadd.f32 %v369, %v408
    %v410 = vpop.f32.mrf.mxu0
    %v411 = vadd.f32 %v373, %v410
    %412 = vmatmul.bf16.gmra.mxu0 %v397
    %v413 = vpop.f32.mrf.mxu0
    %v414 = vadd.f32 %v377, %v413
    %v415 = vpop.f32.mrf.mxu0
    %v416 = vadd.f32 %v381, %v415
    %417 = vdwg.mxu0
    %418 = vmatpush.bf16.msra.mxu0 0
    %419 = vmatpush.bf16.msra.mxu0 0
    %420 = vmatpush.bf16.msra.mxu0 0
    %421 = vmatpush.bf16.msra.mxu0 0
    %422 = vmatpush.bf16.msra.mxu0 0
    %423 = vmatpush.bf16.msra.mxu0 0
    %424 = vmatpush.bf16.msra.mxu0 %v366
    %425 = vmatpush.bf16.msra.mxu0 %v364
    %426 = vmatmul.bf16.gmra.mxu0 %v394
    %v427 = vpop.f32.mrf.mxu0
    %v428 = vadd.f32 %v369, %v427
    %v429 = vpop.f32.mrf.mxu0
    %v430 = vadd.f32 %v373, %v429
    %431 = vmatmul.bf16.gmra.mxu0 %v397
    %v432 = vpop.f32.mrf.mxu0
    %v433 = vadd.f32 %v377, %v432
    %v434 = vpop.f32.mrf.mxu0
    %v435 = vadd.f32 %v381, %v434
    %436 = vdwg.mxu0
    %v437 = vmax.f32 %v409, 0.0
    %v438 = vmax.f32 %v428, 0.0
    %v439 = vmax.f32 %v411, 0.0
    %v440 = vmax.f32 %v430, 0.0
    %v441 = vmax.f32 %v414, 0.0
    %v442 = vmax.f32 %v433, 0.0
    %v443 = vmax.f32 %v416, 0.0
    %v444 = vmax.f32 %v435, 0.0
    %v445 = vpack.c.bf16 %v439, %v437
    %v446 = vpack.c.bf16 %v440, %v438
    %v447 = vpack.c.bf16 %v443, %v441
    %v448 = vpack.c.bf16 %v444, %v442
    %450 = vset.pattern.permute.xlu0 3
    %451 = vperm.xlu0 %450, %v36
    %v452 = vpop.permute.xlu0 %451
    %v455 = vsel %vm310, %v31, 0
    %457 = vmatpush.bf16.msra.mxu0 0
    %458 = vmatpush.bf16.msra.mxu0 0
    %459 = vmatpush.bf16.msra.mxu0 0
    %460 = vmatpush.bf16.msra.mxu0 0
    %461 = vmatpush.bf16.msra.mxu0 0
    %462 = vmatpush.bf16.msra.mxu0 0
    %463 = vmatpush.bf16.msra.mxu0 %v447
    %464 = vmatpush.bf16.msra.mxu0 %v445
    %465 = vmatmul.bf16.gmra.mxu0 %v455
    %v466 = vpop.f32.mrf.mxu0
    %v467 = vadd.f32 %v452, %v466
    %v468 = vpop.f32.mrf.mxu0
    %469 = vdwg.mxu0
    %470 = vmatpush.bf16.msra.mxu0 0
    %471 = vmatpush.bf16.msra.mxu0 0
    %472 = vmatpush.bf16.msra.mxu0 0
    %473 = vmatpush.bf16.msra.mxu0 0
    %474 = vmatpush.bf16.msra.mxu0 0
    %475 = vmatpush.bf16.msra.mxu0 0
    %476 = vmatpush.bf16.msra.mxu0 %v448
    %477 = vmatpush.bf16.msra.mxu0 %v446
    %478 = vmatmul.bf16.gmra.mxu0 %v455
    %v479 = vpop.f32.mrf.mxu0
    %v480 = vadd.f32 %v452, %v479
    %v481 = vpop.f32.mrf.mxu0
    %482 = vdwg.mxu0
    %v483 = vmax.f32 %v467, 0.0
    %v484 = vmax.f32 %v480, 0.0
    %vm485 = vcmp.ne.f32.partialorder %v467, %v467
    %vm486 = vcmp.ne.f32.partialorder %v480, %v480
    %v487 = vadd.f32 %v467, 0.0
    %v488 = vadd.f32 %v480, 0.0
    %v489 = vand.u32 2147483647, %v467
    %v490 = vand.u32 2147483647, %v480
    %v491 = vsub.f32 0.0, %v489
    %v492 = vsub.f32 0.0, %v490
    %v493 = vmul.f32 %v491, 1.442695
    %v494 = vpow.pop %v493
    %v495 = vmul.f32 %v492, 1.442695
    %v496 = vpow.pop %v495
    %v497 = vadd.f32 %v494, 1.0
    %v498 = vlog2.pop %v497
    %v499 = vmul.f32 %v498, 0.6931472
    %v500 = vmul.f32 -0.5, %v494
    %v501 = vadd.f32 %v500, 1.0
    %v502 = vmul.f32 %v501, %v494
    %v503 = vand.u32 2147483647, %v494
    %vm504 = vcmp.lt.f32.partialorder %v503, 0.0004427343
    %v505 = vsel %vm504, %v502, %v499
    %v506 = vadd.f32 %v496, 1.0
    %v507 = vlog2.pop %v506
    %v508 = vmul.f32 %v507, 0.6931472
    %v509 = vmul.f32 -0.5, %v496
    %v510 = vadd.f32 %v509, 1.0
    %v511 = vmul.f32 %v510, %v496
    %v512 = vand.u32 2147483647, %v496
    %vm513 = vcmp.lt.f32.partialorder %v512, 0.0004427343
    %v514 = vsel %vm513, %v511, %v508
    %v515 = vadd.f32 %v483, %v505
    %v516 = vadd.f32 %v484, %v514
    %v517 = vsel %vm485, %v487, %v515
    %v518 = vsel %vm486, %v488, %v516
    %v521 = vrot.slane %v518, 7
    %vm522 = vcmask 1040384
    %v523 = vsel %vm522, %v517, %v521
    %v525 = vlaneseq
    %vm526 = vcmp.ge.s32.totalorder %v525, 0
    %vm527 = vcmp.lt.s32.totalorder %v525, 256
    %vm528 = vmand %vm526, %vm527
    %529 = vst.msk [vmem:[#allocation2] sm:$0x3] %vm528, %v523
    // Predicated region
    $region18: #{tpu_custom_call.1} parent=1 // pred_check
      _
    $region19: #{tpu_custom_call.1} parent=1 // pred_check_branch
      %531 = sbr.rel (0) target = $region21
    $region20: #{tpu_custom_call.1} parent=1 // pred_region
      %533 = vsyncadd [#allocation3], 0
      %s535 = sshll.u32 [#allocation2], 4
      %s536 = int_to_ptr.vmem [resolvable:$true] %s535
      %s537 = sshll.u32 %s4, 4
      %s538 = int_to_ptr.hbm [resolvable:$true] %s537
      %540 = dma.vmem_to_hbm [thread:$0]  %s536, 32, %s538, [#allocation3]
    $region21: #{tpu_custom_call.1} parent=1 // pred_fallthru
      _
    // Predicated region
    $region22: #{tpu_custom_call.1} parent=1 // pred_check
      _
    $region23: #{tpu_custom_call.1} parent=1 // pred_check_branch
      %542 = sbr.rel (0) target = $region25
    $region24: #{tpu_custom_call.1} parent=1 // pred_region
      %544 = dma.done [#allocation3], 32
    $region25: #{tpu_custom_call.1} parent=1 // pred_fallthru
      _
    %545 = vsyncpa [#allocation3], 1

</llo_original>
